<compile_context>
chip_gen: v7x
topology: tpu7x:2x2x1
jax: 0.10.0
libtpu: 0.0.40
codegen_flags: <defaults>
</compile_context>

<pallas_src>
import jax
import jax.numpy as jnp
from jax.experimental import pallas as pl
from jax.experimental.pallas import tpu as pltpu

# ---- model sizes (match the PyTorch module's constructor) ----
N_NODES = 16
IN_CHANNELS = 4
HIDDEN_CHANNELS = 32
NUM_CLASSES = 8

# ---- batched kernel layout constants ----
BB = 8                       # graphs per grid step -> BB*N_NODES = 128 MXU rows
BLK_ROWS = BB * N_NODES      # 128
C_IN_PAD = 8                 # in-channels zero-padded to a sublane multiple
LANES = 128                  # lane-dense width for slab / hidden / output

# packed weight-slab row offsets (all multiples of 8 -> tile-aligned ref slices)
ROW_P = 0                                  # pooling matrix   [BB, 128]
ROW_W1 = ROW_P + BB                        # w1 (padded)      [C_IN_PAD, 128]
ROW_W2 = ROW_W1 + C_IN_PAD                 # w2 (padded)      [128, 128]
ROW_WFC = ROW_W2 + LANES                   # wfc (padded)     [128, 128]
ROW_B = ROW_WFC + LANES                    # biases           [8, 128] (b1,b2,bfc)
SLAB_ROWS = ROW_B + 8                      # 280


def stgcn_kernel(x_ref, a_ref, w_ref, out_ref):
    """One grid step = BB graphs stacked along the node axis.

    x_ref   : [BB*N, C_IN_PAD]   node features of BB graphs (zero-padded cols)
    a_ref   : [BB*N, BB*N]       block-diagonal normalized adjacency
    w_ref   : [SLAB_ROWS, 128]   packed { pool, w1, w2, wfc, b1, b2, bfc }
    out_ref : [BB, 128]          lane-dense logits (first NUM_CLASSES lanes valid)
    """
    x = x_ref[...]
    a = a_ref[...]

    p = w_ref[ROW_P:ROW_P + BB, :]              # [BB, 128]  per-graph mean pool
    w1 = w_ref[ROW_W1:ROW_W1 + C_IN_PAD, :]     # [8, 128]   zero-padded
    w2 = w_ref[ROW_W2:ROW_W2 + LANES, :]        # [128, 128] zero-padded
    wfc = w_ref[ROW_WFC:ROW_WFC + LANES, :]     # [128, 128] zero-padded
    biases = w_ref[ROW_B:ROW_B + 8, :]          # [8, 128]
    b1 = biases[0:1, :]
    b2 = biases[1:2, :]
    bfc = biases[2:3, :]

    # --- GCNConv 1: relu(A_hat @ (X @ W1) + b1)  (padded lanes stay zero) ---
    h = jnp.dot(x, w1, preferred_element_type=jnp.float32)           # [128,128]
    h = jnp.dot(a, h, preferred_element_type=jnp.float32) + b1
    h = jnp.maximum(h, 0.0)

    # --- GCNConv 2: relu(A_hat @ (H @ W2) + b2) ---
    h = jnp.dot(h, w2, preferred_element_type=jnp.float32)
    h = jnp.dot(a, h, preferred_element_type=jnp.float32) + b2
    h = jnp.maximum(h, 0.0)

    # --- per-graph mean pool as a matmul, then fc; lane-dense store ---
    pooled = jnp.dot(p, h, preferred_element_type=jnp.float32)       # [BB, 128]
    out_ref[...] = (jnp.dot(pooled, wfc, preferred_element_type=jnp.float32)
                    + bfc)


# ---------------- plain-JAX glue ----------------

def normalized_adjacency(edge_index, num_nodes):
    """GCNConv-style symmetric normalization with self-loops (dense, unweighted)."""
    src, dst = edge_index[0], edge_index[1]
    a = jnp.zeros((num_nodes, num_nodes), jnp.float32)
    a = a.at[dst, src].set(1.0)                      # message src -> dst
    eye = jnp.eye(num_nodes, dtype=jnp.float32)
    a = jnp.maximum(a, eye)                          # add self-loops (unweighted)
    deg = jnp.sum(a, axis=1)
    d_inv_sqrt = jnp.where(deg > 0, 1.0 / jnp.sqrt(deg), 0.0)
    return a * d_inv_sqrt[:, None] * d_inv_sqrt[None, :]


def init_params(key):
    k1, k2, k3 = jax.random.split(key, 3)
    w1 = jax.random.normal(k1, (IN_CHANNELS, HIDDEN_CHANNELS), jnp.float32) * 0.2
    b1 = jnp.zeros((1, HIDDEN_CHANNELS), jnp.float32)
    w2 = jax.random.normal(k2, (HIDDEN_CHANNELS, HIDDEN_CHANNELS), jnp.float32) * 0.1
    b2 = jnp.full((1, HIDDEN_CHANNELS), 0.01, jnp.float32)
    wfc = jax.random.normal(k3, (HIDDEN_CHANNELS, NUM_CLASSES), jnp.float32) * 0.1
    bfc = jnp.full((1, NUM_CLASSES), 0.02, jnp.float32)
    return w1, b1, w2, b2, wfc, bfc


def pack_weights(params, pool):
    """Pack weights, biases and the pooling matrix into one [280, 128] slab."""
    w1, b1, w2, b2, wfc, bfc = params
    slab = jnp.zeros((SLAB_ROWS, LANES), jnp.float32)
    slab = slab.at[ROW_P:ROW_P + BB, :BLK_ROWS].set(pool)
    slab = slab.at[ROW_W1:ROW_W1 + IN_CHANNELS, :HIDDEN_CHANNELS].set(w1)
    slab = slab.at[ROW_W2:ROW_W2 + HIDDEN_CHANNELS, :HIDDEN_CHANNELS].set(w2)
    slab = slab.at[ROW_WFC:ROW_WFC + HIDDEN_CHANNELS, :NUM_CLASSES].set(wfc)
    slab = slab.at[ROW_B + 0, :HIDDEN_CHANNELS].set(b1[0])
    slab = slab.at[ROW_B + 1, :HIDDEN_CHANNELS].set(b2[0])
    slab = slab.at[ROW_B + 2, :NUM_CLASSES].set(bfc[0])
    return slab


def stgcn_forward(a_hat, x_batched, params):
    """Run the STGCN forward for B independent graphs sharing A_hat.

    x_batched : [B, N_NODES, IN_CHANNELS]  ->  logits [B, NUM_CLASSES]
    (Row g is exactly the PyTorch module's output for graph g.)
    """
    B = x_batched.shape[0]
    assert B % BB == 0, "batch must be a multiple of BB"

    # constants shared by every grid step
    a_blk = jnp.kron(jnp.eye(BB, dtype=jnp.float32), a_hat)           # [128, 128]
    pool = jnp.kron(jnp.eye(BB, dtype=jnp.float32),
                    jnp.full((1, N_NODES), 1.0 / N_NODES, jnp.float32))  # [8, 128]
    wslab = pack_weights(params, pool)

    x_flat = x_batched.reshape(B * N_NODES, IN_CHANNELS)
    x_pad = jnp.zeros((B * N_NODES, C_IN_PAD), jnp.float32)
    x_pad = x_pad.at[:, :IN_CHANNELS].set(x_flat)

    out = pl.pallas_call(
        stgcn_kernel,
        out_shape=jax.ShapeDtypeStruct((B, LANES), jnp.float32),
        grid=(B // BB,),
        in_specs=[
            pl.BlockSpec((BLK_ROWS, C_IN_PAD), lambda i: (i, 0)),   # per-step X
            pl.BlockSpec((BLK_ROWS, BLK_ROWS), lambda i: (0, 0)),   # A_blk (resident)
            pl.BlockSpec((SLAB_ROWS, LANES), lambda i: (0, 0)),     # weight slab (resident)
        ],
        out_specs=pl.BlockSpec((BB, LANES), lambda i: (i, 0)),
        compiler_params=pltpu.CompilerParams(
            dimension_semantics=("parallel",)),                     # megacore on v7x
    )(x_pad, a_blk, wslab)

    return out[:, :NUM_CLASSES]


def reference_forward(a_hat, x, params):
    """Pure-JAX reference of one graph's forward (matches the PyTorch module)."""
    w1, b1, w2, b2, wfc, bfc = params
    h = jnp.maximum(a_hat @ (x @ w1) + b1, 0.0)
    h = jnp.maximum(a_hat @ (h @ w2) + b2, 0.0)
    pooled = jnp.mean(h, axis=0)
    return pooled @ wfc + bfc[0]


if __name__ == "__main__":
    key = jax.random.PRNGKey(0)
    kx, kp = jax.random.split(key)

    B = 64  # batch of independent graphs (e.g. behavior frames)
    x = jax.random.normal(kx, (B, N_NODES, IN_CHANNELS), jnp.float32)

    # synthetic bidirectional ring graph edge_index: [2, 2*N]
    idx = jnp.arange(N_NODES)
    src = jnp.concatenate([idx, (idx + 1) % N_NODES])
    dst = jnp.concatenate([(idx + 1) % N_NODES, idx])
    edge_index = jnp.stack([src, dst], axis=0)

    a_hat = normalized_adjacency(edge_index, N_NODES)
    params = init_params(kp)

    logits = jax.block_until_ready(stgcn_forward(a_hat, x, params))

    ref = jax.vmap(lambda xg: reference_forward(a_hat, xg, params))(x)
    assert logits.shape == (B, NUM_CLASSES)
    assert jnp.allclose(logits, ref, atol=1e-4, rtol=1e-4)

    # original module's single-graph [num_classes] output == any row, e.g. graph 0
    single = logits[0]
    assert single.shape == (NUM_CLASSES,)

    print("KERNEL_OK")
</pallas_src>

<mosaic_0001>
module attributes {stable_mosaic.version = 11 : i64} {
  func.func @stgcn_kernel(%arg0: i32, %arg1: memref<128x8xf32, #tpu.memory_space<vmem>>, %arg2: memref<128x128xf32, #tpu.memory_space<vmem>>, %arg3: memref<280x128xf32, #tpu.memory_space<vmem>>, %arg4: memref<8x128xf32, #tpu.memory_space<vmem>>) attributes {dimension_semantics = [#tpu.dimension_semantics<parallel>], iteration_bounds = array<i64: 8>, scalar_prefetch = 0 : i64, scratch_operands = 0 : i64, tpu.core_type = #tpu.core_type<tc>, window_params = [{transform_indices = @transform_0, window_bounds = array<i64: 128, 8>}, {pipeline_mode = #tpu.pipeline_mode<synchronous>, transform_indices = @transform_1, window_bounds = array<i64: 128, 128>}, {pipeline_mode = #tpu.pipeline_mode<synchronous>, transform_indices = @transform_2, window_bounds = array<i64: 280, 128>}, {transform_indices = @transform_3, window_bounds = array<i64: 8, 128>}]} {
    %c0 = arith.constant 0 : index
    %c0_0 = arith.constant 0 : index
    %0 = vector.load %arg1[%c0, %c0_0] : memref<128x8xf32, #tpu.memory_space<vmem>>, vector<128x8xf32>
    %c0_1 = arith.constant 0 : index
    %c0_2 = arith.constant 0 : index
    %1 = vector.load %arg2[%c0_1, %c0_2] : memref<128x128xf32, #tpu.memory_space<vmem>>, vector<128x128xf32>
    %c0_3 = arith.constant 0 : index
    %c0_4 = arith.constant 0 : index
    %2 = vector.load %arg3[%c0_3, %c0_4] : memref<280x128xf32, #tpu.memory_space<vmem>>, vector<8x128xf32>
    %c8 = arith.constant 8 : index
    %c0_5 = arith.constant 0 : index
    %3 = vector.load %arg3[%c8, %c0_5] : memref<280x128xf32, #tpu.memory_space<vmem>>, vector<8x128xf32>
    %c16 = arith.constant 16 : index
    %c0_6 = arith.constant 0 : index
    %4 = vector.load %arg3[%c16, %c0_6] : memref<280x128xf32, #tpu.memory_space<vmem>>, vector<128x128xf32>
    %c144 = arith.constant 144 : index
    %c0_7 = arith.constant 0 : index
    %5 = vector.load %arg3[%c144, %c0_7] : memref<280x128xf32, #tpu.memory_space<vmem>>, vector<128x128xf32>
    %c272 = arith.constant 272 : index
    %c0_8 = arith.constant 0 : index
    %6 = vector.load %arg3[%c272, %c0_8] : memref<280x128xf32, #tpu.memory_space<vmem>>, vector<8x128xf32>
    %7 = vector.extract_strided_slice %6 {offsets = [0, 0], sizes = [1, 128], strides = [1, 1]} : vector<8x128xf32> to vector<1x128xf32>
    %8 = vector.extract_strided_slice %6 {offsets = [1, 0], sizes = [1, 128], strides = [1, 1]} : vector<8x128xf32> to vector<1x128xf32>
    %9 = vector.extract_strided_slice %6 {offsets = [2, 0], sizes = [1, 128], strides = [1, 1]} : vector<8x128xf32> to vector<1x128xf32>
    %cst = arith.constant dense<0.000000e+00> : vector<128x128xf32>
    %10 = tpu.matmul %0, %3, %cst {dimension_numbers = #tpu.dot_dimension_numbers<[1], [0], [0], [1], [0, 0, 1, 1], [], []>} : vector<128x8xf32>, vector<8x128xf32>, vector<128x128xf32> -> vector<128x128xf32>
    %cst_9 = arith.constant dense<0.000000e+00> : vector<128x128xf32>
    %11 = tpu.matmul %1, %10, %cst_9 {dimension_numbers = #tpu.dot_dimension_numbers<[1], [0], [0], [1], [0, 0, 1, 1], [], []>} : vector<128x128xf32>, vector<128x128xf32>, vector<128x128xf32> -> vector<128x128xf32>
    %12 = vector.broadcast %7 : vector<1x128xf32> to vector<128x128xf32>
    %13 = arith.addf %11, %12 : vector<128x128xf32>
    %cst_10 = arith.constant 0.000000e+00 : f32
    %14 = vector.broadcast %cst_10 : f32 to vector<128x128xf32>
    %15 = arith.maximumf %13, %14 : vector<128x128xf32>
    %cst_11 = arith.constant dense<0.000000e+00> : vector<128x128xf32>
    %16 = tpu.matmul %15, %4, %cst_11 {dimension_numbers = #tpu.dot_dimension_numbers<[1], [0], [0], [1], [0, 0, 1, 1], [], []>} : vector<128x128xf32>, vector<128x128xf32>, vector<128x128xf32> -> vector<128x128xf32>
    %cst_12 = arith.constant dense<0.000000e+00> : vector<128x128xf32>
    %17 = tpu.matmul %1, %16, %cst_12 {dimension_numbers = #tpu.dot_dimension_numbers<[1], [0], [0], [1], [0, 0, 1, 1], [], []>} : vector<128x128xf32>, vector<128x128xf32>, vector<128x128xf32> -> vector<128x128xf32>
    %18 = vector.broadcast %8 : vector<1x128xf32> to vector<128x128xf32>
    %19 = arith.addf %17, %18 : vector<128x128xf32>
    %cst_13 = arith.constant 0.000000e+00 : f32
    %20 = vector.broadcast %cst_13 : f32 to vector<128x128xf32>
    %21 = arith.maximumf %19, %20 : vector<128x128xf32>
    %cst_14 = arith.constant dense<0.000000e+00> : vector<8x128xf32>
    %22 = tpu.matmul %2, %21, %cst_14 {dimension_numbers = #tpu.dot_dimension_numbers<[1], [0], [0], [1], [0, 0, 1, 1], [], []>} : vector<8x128xf32>, vector<128x128xf32>, vector<8x128xf32> -> vector<8x128xf32>
    %cst_15 = arith.constant dense<0.000000e+00> : vector<8x128xf32>
    %23 = tpu.matmul %22, %5, %cst_15 {dimension_numbers = #tpu.dot_dimension_numbers<[1], [0], [0], [1], [0, 0, 1, 1], [], []>} : vector<8x128xf32>, vector<128x128xf32>, vector<8x128xf32> -> vector<8x128xf32>
    %24 = vector.broadcast %9 : vector<1x128xf32> to vector<8x128xf32>
    %25 = arith.addf %23, %24 : vector<8x128xf32>
    %c0_16 = arith.constant 0 : index
    %c0_17 = arith.constant 0 : index
    %26 = vector.load %arg4[%c0_16, %c0_17] : memref<8x128xf32, #tpu.memory_space<vmem>>, vector<8x128xf32>
    tpu.vector_store %arg4[%c0_16, %c0_17], %25 {strides = array<i32>} : memref<8x128xf32, #tpu.memory_space<vmem>>, vector<8x128xf32>,
    return
  }
  func.func @transform_0(%arg0: i32) -> (i32, i32) {
    %c0_i32 = arith.constant 0 : i32
    %c0_i32_0 = arith.constant 0 : i32
    return %arg0, %c0_i32 : i32, i32
  }
  func.func @transform_1(%arg0: i32) -> (i32, i32) {
    %c0_i32 = arith.constant 0 : i32
    %c0_i32_0 = arith.constant 0 : i32
    %c0_i32_1 = arith.constant 0 : i32
    return %c0_i32, %c0_i32_0 : i32, i32
  }
  func.func @transform_2(%arg0: i32) -> (i32, i32) {
    %c0_i32 = arith.constant 0 : i32
    %c0_i32_0 = arith.constant 0 : i32
    %c0_i32_1 = arith.constant 0 : i32
    return %c0_i32, %c0_i32_0 : i32, i32
  }
  func.func @transform_3(%arg0: i32) -> (i32, i32) {
    %c0_i32 = arith.constant 0 : i32
    %c0_i32_0 = arith.constant 0 : i32
    return %arg0, %c0_i32 : i32, i32
  }
}

</mosaic_0001>

<llo_original>
// kernel: tpu_custom_call.1
$region0: #{tpu_custom_call.1}
  #allocation0 [shape = 'u32[]', space=smem, size = 0x4, offset = 0x4, fixed_abs, tag = 'smem constant byte address 0x4 - core index']
  #allocation1 [shape = 'u32[144,128]{1,0:T(1,128)}', space=vmem, size = 0x12000, scoped, tag = 'internal scratch']
  %s0 = inlined_call_operand.vmem [shape: f32[1024,8], index: 0, kind: input, shape index: {}]
  %s1 = inlined_call_operand.vmem [shape: f32[128,128], index: 1, kind: input, shape index: {}]
  %s2 = inlined_call_operand.vmem [shape: f32[280,128], index: 2, kind: input, shape index: {}]
  %s3 = inlined_call_operand.hbm [shape: f32[64,128], index: 3, kind: output, shape index: {}]
  %s4 = sld [smem:[#allocation0]]
  $region45: #{tpu_custom_call.1} parent=0
    _
  %s6 = ssub.s32 1, %s4
  %s7 = scalar_select 0, %s6, %s4
  $region1: #{tpu_custom_call.1} parent=0
    #allocation2 [shape = 'u8[8192]{0}', space=vmem, size = 0x2000, scoped, tag = 'output window, operand 0']
    #allocation3 [shape = 's32[2]{0}', space=sflag, size = 0x8, scoped, tag = 'scoped memory for tpu_custom_call.1']
    %8 = vsyncpa [#allocation3], 0
    %s9 = scalar_lea.sflag [#allocation3], 1
    %10 = vsyncpa %s9, 0
    loop: start=0, step=1, limit=10
    $region2: #{tpu_custom_call.1} parent=1 // loop_pre_header
      _
    $region3: #{tpu_custom_call.1} parent=1 // loop_header
      %s12 = sphi 0, %s16
      %p13 = scmp.ge.s32.totalorder %s12, 10
      %s22 = sphi 0, %s24
      %s25 = sphi 0, %s22
      %s26 = sphi 0, %s25
      %s42 = sphi 0, %s26
      %s46 = sphi 0, %s46
      %s48 = sphi 0, %s46
      %s49 = sphi 0, %s48
      %s63 = sphi 0, %s49
      %s67 = sphi 0, %s67
      %s69 = sphi 0, %s67
      %s70 = sphi 0, %s69
      %s84 = sphi 0, %s70
      %s90 = sphi 0, %s92
      %s93 = sphi 0, %s90
      %s94 = sphi 0, %s93
      %s110 = sphi 0, %s94
    $region4: #{tpu_custom_call.1} parent=1 // loop_header_branch
      %15 = sbr.rel (%p13) target = $region8
    $region5: #{tpu_custom_call.1} parent=1 // loop_body
      %s17 = ssub.s32 %s12, 1
      %s18 = ssub.s32 %s12, 2
      %s19 = sadd.s32 %s12, 1
      %s20 = ssub.s32 %s12, %s19
      %p21 = scmp.eq.s32.totalorder %s20, 0
      %s23 = sadd.s32 %s22, 1
      %s24 = scalar_select %p21, %s22, %s23
      %p27 = pneg %p21
      %p28 = scmp.eq.s32.totalorder %s12, 7
      %p29 = por %p27, %p28
      %p30 = scmp.ne.s32.totalorder %s22, %s25
      %p31 = scmp.eq.s32.totalorder %s12, 0
      %p32 = por %p30, %p31
      %p33 = scmp.ne.s32.totalorder %s22, %s25
      %p34 = scmp.eq.s32.totalorder %s17, 7
      %p35 = por %p33, %p34
      %p36 = scmp.ne.s32.totalorder %s25, %s26
      %p37 = scmp.eq.s32.totalorder %s17, 0
      %p38 = por %p36, %p37
      %p39 = scmp.ne.s32.totalorder %s25, %s26
      %p40 = scmp.eq.s32.totalorder %s18, 7
      %p41 = por %p39, %p40
      %p43 = scmp.ne.s32.totalorder %s26, %s42
      %p44 = scmp.eq.s32.totalorder %s18, 0
      %p45 = por %p43, %p44
      %s47 = sadd.s32 %s46, 1
      %p50 = scmp.eq.s32.totalorder %s12, 7
      %p51 = scmp.ne.s32.totalorder %s46, %s48
      %p52 = scmp.eq.s32.totalorder %s12, 0
      %p53 = por %p51, %p52
      %p54 = scmp.ne.s32.totalorder %s46, %s48
      %p55 = scmp.eq.s32.totalorder %s17, 7
      %p56 = por %p54, %p55
      %p57 = scmp.ne.s32.totalorder %s48, %s49
      %p58 = scmp.eq.s32.totalorder %s17, 0
      %p59 = por %p57, %p58
      %p60 = scmp.ne.s32.totalorder %s48, %s49
      %p61 = scmp.eq.s32.totalorder %s18, 7
      %p62 = por %p60, %p61
      %p64 = scmp.ne.s32.totalorder %s49, %s63
      %p65 = scmp.eq.s32.totalorder %s18, 0
      %p66 = por %p64, %p65
      %s68 = sadd.s32 %s67, 1
      %p71 = scmp.eq.s32.totalorder %s12, 7
      %p72 = scmp.ne.s32.totalorder %s67, %s69
      %p73 = scmp.eq.s32.totalorder %s12, 0
      %p74 = por %p72, %p73
      %p75 = scmp.ne.s32.totalorder %s67, %s69
      %p76 = scmp.eq.s32.totalorder %s17, 7
      %p77 = por %p75, %p76
      %p78 = scmp.ne.s32.totalorder %s69, %s70
      %p79 = scmp.eq.s32.totalorder %s17, 0
      %p80 = por %p78, %p79
      %p81 = scmp.ne.s32.totalorder %s69, %s70
      %p82 = scmp.eq.s32.totalorder %s18, 7
      %p83 = por %p81, %p82
      %p85 = scmp.ne.s32.totalorder %s70, %s84
      %p86 = scmp.eq.s32.totalorder %s18, 0
      %p87 = por %p85, %p86
      %s88 = ssub.s32 %s12, %s19
      %p89 = scmp.eq.s32.totalorder %s88, 0
      %s91 = sadd.s32 %s90, 1
      %s92 = scalar_select %p89, %s90, %s91
      %p95 = pneg %p89
      %p96 = scmp.eq.s32.totalorder %s12, 7
      %p97 = por %p95, %p96
      %p98 = scmp.ne.s32.totalorder %s90, %s93
      %p99 = scmp.eq.s32.totalorder %s12, 0
      %p100 = por %p98, %p99
      %p101 = scmp.ne.s32.totalorder %s90, %s93
      %p102 = scmp.eq.s32.totalorder %s17, 7
      %p103 = por %p101, %p102
      %p104 = scmp.ne.s32.totalorder %s93, %s94
      %p105 = scmp.eq.s32.totalorder %s17, 0
      %p106 = por %p104, %p105
      %p107 = scmp.ne.s32.totalorder %s93, %s94
      %p108 = scmp.eq.s32.totalorder %s18, 7
      %p109 = por %p107, %p108
      %p111 = scmp.ne.s32.totalorder %s94, %s110
      %p112 = scmp.eq.s32.totalorder %s18, 0
      %p113 = por %p111, %p112
      %p114 = scmp.le.s32.totalorder 1, %s12
      %p115 = scmp.lt.s32.totalorder %s12, 9
      %p116 = pnand %p114, %p115
      %p117 = pneg %p116
      // Predicated region
      $region9: #{tpu_custom_call.1} parent=5 // pred_check
        _
      $region10: #{tpu_custom_call.1} parent=5 // pred_check_branch
        %119 = sbr.rel (%p116) target = $region12
      $region11: #{tpu_custom_call.1} parent=5 // pred_region
        %s120 = ssub.s32 %s12, 1
        // Predicated region
        $region13: #{tpu_custom_call.1} parent=11 // pred_check
          %p121 = pneg %p59
        $region14: #{tpu_custom_call.1} parent=11 // pred_check_branch
          %123 = sbr.rel (%p121) target = $region16
        $region15: #{tpu_custom_call.1} parent=11 // pred_region
          _
        $region16: #{tpu_custom_call.1} parent=11 // pred_fallthru
          _
        // Predicated region
        $region17: #{tpu_custom_call.1} parent=11 // pred_check
          %p124 = pneg %p80
        $region18: #{tpu_custom_call.1} parent=11 // pred_check_branch
          %126 = sbr.rel (%p124) target = $region20
        $region19: #{tpu_custom_call.1} parent=11 // pred_region
          _
        $region20: #{tpu_custom_call.1} parent=11 // pred_fallthru
          _
      $region12: #{tpu_custom_call.1} parent=5 // pred_fallthru
        _
      %p127 = scmp.lt.s32.totalorder %s12, 8
      // Predicated region
      $region21: #{tpu_custom_call.1} parent=5 // pred_check
        %p128 = pneg %p127
      $region22: #{tpu_custom_call.1} parent=5 // pred_check_branch
        %130 = sbr.rel (%p128) target = $region24
      $region23: #{tpu_custom_call.1} parent=5 // pred_region
        // Predicated region
        $region25: #{tpu_custom_call.1} parent=23 // pred_check
          %p131 = pneg %p32
        $region26: #{tpu_custom_call.1} parent=23 // pred_check_branch
          %133 = sbr.rel (%p131) target = $region28
        $region27: #{tpu_custom_call.1} parent=23 // pred_region
          %s134 = smul.u32 16, %s12
          %p135 = scmp.lt.s32.totalorder %s134, 127
          %s136 = scalar_select %p135, %s134, 127
          %s137 = smul.addr %s136, 8
          %s138 = scalar_lea.vmem %s0, %s137
          %s139 = smul.u32 16, %s12
        $region28: #{tpu_custom_call.1} parent=23 // pred_fallthru
          _
      $region24: #{tpu_custom_call.1} parent=5 // pred_fallthru
        _
      %p140 = scmp.le.s32.totalorder 1, %s12
      %p141 = scmp.lt.s32.totalorder %s12, 9
      %p142 = pnand %p140, %p141
      %p143 = pneg %p142
      // Predicated region
      $region29: #{tpu_custom_call.1} parent=5 // pred_check
        _
      $region30: #{tpu_custom_call.1} parent=5 // pred_check_branch
        %145 = sbr.rel (%p142) target = $region32
      $region31: #{tpu_custom_call.1} parent=5 // pred_region
        %s146 = ssub.s32 %s12, 1
        %s147 = smul.u32 16, %s17
        %p148 = scmp.lt.s32.totalorder %s147, 127
        %s149 = scalar_select %p148, %s147, 127
        %s150 = smul.addr %s149, 8
        %s151 = scalar_lea.vmem %s0, %s150
        %p152 = pneg %p38
        %p153 = pneg %p35
        %p154 = pneg %p59
        %p155 = pneg %p56
        %p156 = pneg %p80
        %p157 = pneg %p77
        %p158 = pneg %p106
        %p159 = pneg %p103
        %s160 = sand.u32 %s93, 1
        %s161 = scalar_lea.sflag [#allocation3], %s160
        %s162 = sand.u32 %s93, 1
        %s163 = smul.addr %s162, 8
        %s164 = scalar_lea.vmem [#allocation2], %s163
        %s165 = smul.u32 16, %s17
        %p166 = scmp.lt.s32.totalorder %s165, 127
        %s167 = scalar_select %p166, %s165, 127
        %s168 = smul.addr %s167, 8
        %s169 = scalar_lea.vmem %s0, %s168
        %s170 = smul.u32 16, %s17
        %v171 = vld [vmem:[%s169] sm:$0xff]
        %v172 = vld [vmem:[%s169 + $0x8] sm:$0xff]
        %v173 = vld [vmem:[%s169 + $0x10] sm:$0xff]
        %v174 = vld [vmem:[%s169 + $0x18] sm:$0xff]
        %v175 = vld [vmem:[%s169 + $0x20] sm:$0xff]
        %v176 = vld [vmem:[%s169 + $0x28] sm:$0xff]
        %v177 = vld [vmem:[%s169 + $0x30] sm:$0xff]
        %v178 = vld [vmem:[%s169 + $0x38] sm:$0xff]
        %v179 = vld [vmem:[%s169 + $0x40] sm:$0xff]
        %v180 = vld [vmem:[%s169 + $0x48] sm:$0xff]
        %v181 = vld [vmem:[%s169 + $0x50] sm:$0xff]
        %v182 = vld [vmem:[%s169 + $0x58] sm:$0xff]
        %v183 = vld [vmem:[%s169 + $0x60] sm:$0xff]
        %v184 = vld [vmem:[%s169 + $0x68] sm:$0xff]
        %v185 = vld [vmem:[%s169 + $0x70] sm:$0xff]
        %v186 = vld [vmem:[%s169 + $0x78] sm:$0xff]
        %v187 = vld [vmem:[%s1] sm:$0xff]
        %v188 = vld [vmem:[%s1 + $0x8] sm:$0xff]
        %v189 = vld [vmem:[%s1 + $0x10] sm:$0xff]
        %v190 = vld [vmem:[%s1 + $0x18] sm:$0xff]
        %v191 = vld [vmem:[%s1 + $0x20] sm:$0xff]
        %v192 = vld [vmem:[%s1 + $0x28] sm:$0xff]
        %v193 = vld [vmem:[%s1 + $0x30] sm:$0xff]
        %v194 = vld [vmem:[%s1 + $0x38] sm:$0xff]
        %v195 = vld [vmem:[%s1 + $0x40] sm:$0xff]
        %v196 = vld [vmem:[%s1 + $0x48] sm:$0xff]
        %v197 = vld [vmem:[%s1 + $0x50] sm:$0xff]
        %v198 = vld [vmem:[%s1 + $0x58] sm:$0xff]
        %v199 = vld [vmem:[%s1 + $0x60] sm:$0xff]
        %v200 = vld [vmem:[%s1 + $0x68] sm:$0xff]
        %v201 = vld [vmem:[%s1 + $0x70] sm:$0xff]
        %v202 = vld [vmem:[%s1 + $0x78] sm:$0xff]
        %v203 = vld [vmem:[%s2] sm:$0xff]
        %v204 = vld [vmem:[%s2 + $0x8] sm:$0xff]
        %v205 = vld [vmem:[%s2 + $0x10] sm:$0xff]
        %v206 = vld [vmem:[%s2 + $0x18] sm:$0xff]
        %v207 = vld [vmem:[%s2 + $0x20] sm:$0xff]
        %v208 = vld [vmem:[%s2 + $0x28] sm:$0xff]
        %v209 = vld [vmem:[%s2 + $0x30] sm:$0xff]
        %v210 = vld [vmem:[%s2 + $0x38] sm:$0xff]
        %v211 = vld [vmem:[%s2 + $0x40] sm:$0xff]
        %v212 = vld [vmem:[%s2 + $0x48] sm:$0xff]
        %v213 = vld [vmem:[%s2 + $0x50] sm:$0xff]
        %v214 = vld [vmem:[%s2 + $0x58] sm:$0xff]
        %v215 = vld [vmem:[%s2 + $0x60] sm:$0xff]
        %v216 = vld [vmem:[%s2 + $0x68] sm:$0xff]
        %v217 = vld [vmem:[%s2 + $0x70] sm:$0xff]
        %v218 = vld [vmem:[%s2 + $0x78] sm:$0xff]
        %v219 = vld [vmem:[%s2 + $0x80] sm:$0xff]
        %v220 = vld [vmem:[%s2 + $0x88] sm:$0xff]
        %v221 = vld [vmem:[%s2 + $0x90] sm:$0xff]
        %v222 = vld [vmem:[%s2 + $0x98] sm:$0xff]
        %v223 = vld [vmem:[%s2 + $0xa0] sm:$0xff]
        %v224 = vld [vmem:[%s2 + $0xa8] sm:$0xff]
        %v225 = vld [vmem:[%s2 + $0xb0] sm:$0xff]
        %v226 = vld [vmem:[%s2 + $0xb8] sm:$0xff]
        %v227 = vld [vmem:[%s2 + $0xc0] sm:$0xff]
        %v228 = vld [vmem:[%s2 + $0xc8] sm:$0xff]
        %v229 = vld [vmem:[%s2 + $0xd0] sm:$0xff]
        %v230 = vld [vmem:[%s2 + $0xd8] sm:$0xff]
        %v231 = vld [vmem:[%s2 + $0xe0] sm:$0xff]
        %v232 = vld [vmem:[%s2 + $0xe8] sm:$0xff]
        %v233 = vld [vmem:[%s2 + $0xf0] sm:$0xff]
        %v234 = vld [vmem:[%s2 + $0xf8] sm:$0xff]
        %v235 = vld [vmem:[%s2 + $0x100] sm:$0xff]
        %v236 = vld [vmem:[%s2 + $0x108] sm:$0xff]
        %v237 = vld [vmem:[%s2 + $0x110] sm:$0xff]
        %vm238 = vcmask 64512
        %v240 = vsel %vm238, %v171, 0
        %v243 = vsel %vm238, %v172, 0
        %v246 = vsel %vm238, %v173, 0
        %v249 = vsel %vm238, %v174, 0
        %v252 = vsel %vm238, %v175, 0
        %v255 = vsel %vm238, %v176, 0
        %v258 = vsel %vm238, %v177, 0
        %v261 = vsel %vm238, %v178, 0
        %v264 = vsel %vm238, %v179, 0
        %v267 = vsel %vm238, %v180, 0
        %v270 = vsel %vm238, %v181, 0
        %v273 = vsel %vm238, %v182, 0
        %v276 = vsel %vm238, %v183, 0
        %v279 = vsel %vm238, %v184, 0
        %v282 = vsel %vm238, %v185, 0
        %v285 = vsel %vm238, %v186, 0
        %287 = vmatprep.subr.mxu0 0.0
        %288 = vmatpush1.msra.mxu0 %v204
        %289 = vmatprep.subr.mxu0 0.0
        %290 = vmatpush1.msra.mxu0 0.0
        %291 = vmatprep.subr.mxu0 0.0
        %292 = vmatpush1.msra.mxu0 0.0
        %293 = vmatprep.subr.mxu0 0.0
        %294 = vmatpush1.msra.mxu0 0.0
        %295 = vmatprep.subr.mxu0 0.0
        %296 = vmatpush1.msra.mxu0 0.0
        %297 = vmatprep.subr.mxu0 0.0
        %298 = vmatpush1.msra.mxu0 0.0
        %299 = vmatprep.subr.mxu0 0.0
        %300 = vmatpush1.msra.mxu0 0.0
        %301 = vmatprep.subr.mxu0 0.0
        %302 = vmatpush1.msra.mxu0 0.0
        %303 = vmatprep.subr.mxu0 0.0
        %304 = vmatpush1.msra.mxu0 0.0
        %305 = vmatprep.subr.mxu0 0.0
        %306 = vmatpush1.msra.mxu0 0.0
        %307 = vmatprep.subr.mxu0 0.0
        %308 = vmatpush1.msra.mxu0 0.0
        %309 = vmatprep.subr.mxu0 0.0
        %310 = vmatpush1.msra.mxu0 0.0
        %311 = vmatprep.subr.mxu0 0.0
        %312 = vmatpush1.msra.mxu0 0.0
        %313 = vmatprep.subr.mxu0 0.0
        %314 = vmatpush1.msra.mxu0 0.0
        %315 = vmatprep.subr.mxu0 0.0
        %316 = vmatpush1.msra.mxu0 0.0
        %317 = vmatprep.subr.mxu0 0.0
        %318 = vmatpush1.msra.mxu0 0.0
        %319 = vmatprep.subr.mxu0 0.0
        %320 = vmatpush1.msra.mxu0 0.0
        %321 = vmatprep.subr.mxu0 0.0
        %322 = vmatpush1.msra.mxu0 0.0
        %323 = vmatprep.subr.mxu0 0.0
        %324 = vmatpush1.msra.mxu0 0.0
        %325 = vmatprep.subr.mxu0 0.0
        %326 = vmatpush1.msra.mxu0 0.0
        %327 = vmatprep.subr.mxu0 0.0
        %328 = vmatpush1.msra.mxu0 0.0
        %329 = vmatprep.subr.mxu0 0.0
        %330 = vmatpush1.msra.mxu0 0.0
        %331 = vmatprep.subr.mxu0 0.0
        %332 = vmatpush1.msra.mxu0 0.0
        %333 = vmatprep.subr.mxu0 0.0
        %334 = vmatpush1.msra.mxu0 0.0
        %335 = vmatprep.subr.mxu0 0.0
        %336 = vmatpush1.msra.mxu0 0.0
        %337 = vmatprep.subr.mxu0 0.0
        %338 = vmatpush1.msra.mxu0 0.0
        %339 = vmatprep.subr.mxu0 0.0
        %340 = vmatpush1.msra.mxu0 0.0
        %341 = vmatprep.subr.mxu0 0.0
        %342 = vmatpush1.msra.mxu0 0.0
        %343 = vmatprep.subr.mxu0 0.0
        %344 = vmatpush1.msra.mxu0 0.0
        %345 = vmatprep.subr.mxu0 0.0
        %346 = vmatpush1.msra.mxu0 0.0
        %347 = vmatprep.subr.mxu0 0.0
        %348 = vmatpush1.msra.mxu0 0.0
        %349 = vmatprep.subr.mxu0 0.0
        %350 = vmatpush1.msra.mxu0 0.0
        %351 = vmatprep.mubr.f32.mxu0 0.0
        %352 = vmatmul.mubr.f32.gmra.mrb[0].mxu0 %v240
        %v353 = vpop.f32.mrb[0].mxu0
        %v354 = vadd.f32 0.0, %v353
        %v355 = vpop.f32.mrb[0].mxu0
        %356 = vmatprep.mubr.f32.mxu0 0.0
        %357 = vmatmul.mubr.f32.gmra.mrb[0].mxu0 %v243
        %v358 = vpop.f32.mrb[0].mxu0
        %v359 = vadd.f32 0.0, %v358
        %v360 = vpop.f32.mrb[0].mxu0
        %361 = vmatprep.mubr.f32.mxu0 0.0
        %362 = vmatmul.mubr.f32.gmra.mrb[0].mxu0 %v246
        %v363 = vpop.f32.mrb[0].mxu0
        %v364 = vadd.f32 0.0, %v363
        %v365 = vpop.f32.mrb[0].mxu0
        %366 = vmatprep.mubr.f32.mxu0 0.0
        %367 = vmatmul.mubr.f32.gmra.mrb[0].mxu0 %v249
        %v368 = vpop.f32.mrb[0].mxu0
        %v369 = vadd.f32 0.0, %v368
        %v370 = vpop.f32.mrb[0].mxu0
        %371 = vmatprep.mubr.f32.mxu0 0.0
        %372 = vmatmul.mubr.f32.gmra.mrb[0].mxu0 %v252
        %v373 = vpop.f32.mrb[0].mxu0
        %v374 = vadd.f32 0.0, %v373
        %v375 = vpop.f32.mrb[0].mxu0
        %376 = vmatprep.mubr.f32.mxu0 0.0
        %377 = vmatmul.mubr.f32.gmra.mrb[0].mxu0 %v255
        %v378 = vpop.f32.mrb[0].mxu0
        %v379 = vadd.f32 0.0, %v378
        %v380 = vpop.f32.mrb[0].mxu0
        %381 = vmatprep.mubr.f32.mxu0 0.0
        %382 = vmatmul.mubr.f32.gmra.mrb[0].mxu0 %v258
        %v383 = vpop.f32.mrb[0].mxu0
        %v384 = vadd.f32 0.0, %v383
        %v385 = vpop.f32.mrb[0].mxu0
        %386 = vmatprep.mubr.f32.mxu0 0.0
        %387 = vmatmul.mubr.f32.gmra.mrb[0].mxu0 %v261
        %v388 = vpop.f32.mrb[0].mxu0
        %v389 = vadd.f32 0.0, %v388
        %v390 = vpop.f32.mrb[0].mxu0
        %391 = vmatprep.mubr.f32.mxu0 0.0
        %392 = vmatmul.mubr.f32.gmra.mrb[0].mxu0 %v264
        %v393 = vpop.f32.mrb[0].mxu0
        %v394 = vadd.f32 0.0, %v393
        %v395 = vpop.f32.mrb[0].mxu0
        %396 = vmatprep.mubr.f32.mxu0 0.0
        %397 = vmatmul.mubr.f32.gmra.mrb[0].mxu0 %v267
        %v398 = vpop.f32.mrb[0].mxu0
        %v399 = vadd.f32 0.0, %v398
        %v400 = vpop.f32.mrb[0].mxu0
        %401 = vmatprep.mubr.f32.mxu0 0.0
        %402 = vmatmul.mubr.f32.gmra.mrb[0].mxu0 %v270
        %v403 = vpop.f32.mrb[0].mxu0
        %v404 = vadd.f32 0.0, %v403
        %v405 = vpop.f32.mrb[0].mxu0
        %406 = vmatprep.mubr.f32.mxu0 0.0
        %407 = vmatmul.mubr.f32.gmra.mrb[0].mxu0 %v273
        %v408 = vpop.f32.mrb[0].mxu0
        %v409 = vadd.f32 0.0, %v408
        %v410 = vpop.f32.mrb[0].mxu0
        %411 = vmatprep.mubr.f32.mxu0 0.0
        %412 = vmatmul.mubr.f32.gmra.mrb[0].mxu0 %v276
        %v413 = vpop.f32.mrb[0].mxu0
        %v414 = vadd.f32 0.0, %v413
        %v415 = vpop.f32.mrb[0].mxu0
        %416 = vmatprep.mubr.f32.mxu0 0.0
        %417 = vmatmul.mubr.f32.gmra.mrb[0].mxu0 %v279
        %v418 = vpop.f32.mrb[0].mxu0
        %v419 = vadd.f32 0.0, %v418
        %v420 = vpop.f32.mrb[0].mxu0
        %421 = vmatprep.mubr.f32.mxu0 0.0
        %422 = vmatmul.mubr.f32.gmra.mrb[0].mxu0 %v282
        %v423 = vpop.f32.mrb[0].mxu0
        %v424 = vadd.f32 0.0, %v423
        %v425 = vpop.f32.mrb[0].mxu0
        %426 = vmatprep.mubr.f32.mxu0 0.0
        %427 = vmatmul.mubr.f32.gmra.mrb[0].mxu0 %v285
        %v428 = vpop.f32.mrb[0].mxu0
        %v429 = vadd.f32 0.0, %v428
        %v430 = vpop.f32.mrb[0].mxu0
        %431 = vdwg.mxu0
        %v432 = vlaneseq
        %v433 = vshrl.u32 %v432, 7
        %v434 = vsub.s32 0, %v433
        %v435 = vrot.slane %v237, %v434
        %436 = vmatprep.subr.mxu0 0.0
        %437 = vmatpush1.msra.mxu0 %v354
        %438 = vmatprep.subr.mxu0 0.0
        %439 = vmatpush1.msra.mxu0 %v359
        %440 = vmatprep.subr.mxu0 0.0
        %441 = vmatpush1.msra.mxu0 %v364
        %442 = vmatprep.subr.mxu0 0.0
        %443 = vmatpush1.msra.mxu0 %v369
        %444 = vmatprep.subr.mxu0 0.0
        %445 = vmatpush1.msra.mxu0 %v374
        %446 = vmatprep.subr.mxu0 0.0
        %447 = vmatpush1.msra.mxu0 %v379
        %448 = vmatprep.subr.mxu0 0.0
        %449 = vmatpush1.msra.mxu0 %v384
        %450 = vmatprep.subr.mxu0 0.0
        %451 = vmatpush1.msra.mxu0 %v389
        %452 = vmatprep.subr.mxu0 0.0
        %453 = vmatpush1.msra.mxu0 %v394
        %454 = vmatprep.subr.mxu0 0.0
        %455 = vmatpush1.msra.mxu0 %v399
        %456 = vmatprep.subr.mxu0 0.0
        %457 = vmatpush1.msra.mxu0 %v404
        %458 = vmatprep.subr.mxu0 0.0
        %459 = vmatpush1.msra.mxu0 %v409
        %460 = vmatprep.subr.mxu0 0.0
        %461 = vmatpush1.msra.mxu0 %v414
        %462 = vmatprep.subr.mxu0 0.0
        %463 = vmatpush1.msra.mxu0 %v419
        %464 = vmatprep.subr.mxu0 0.0
        %465 = vmatpush1.msra.mxu0 %v424
        %466 = vmatprep.subr.mxu0 0.0
        %467 = vmatpush1.msra.mxu0 %v429
        %468 = vmatprep.subr.mxu0 0.0
        %469 = vmatpush1.msra.mxu0 0.0
        %470 = vmatprep.subr.mxu0 0.0
        %471 = vmatpush1.msra.mxu0 0.0
        %472 = vmatprep.subr.mxu0 0.0
        %473 = vmatpush1.msra.mxu0 0.0
        %474 = vmatprep.subr.mxu0 0.0
        %475 = vmatpush1.msra.mxu0 0.0
        %476 = vmatprep.subr.mxu0 0.0
        %477 = vmatpush1.msra.mxu0 0.0
        %478 = vmatprep.subr.mxu0 0.0
        %479 = vmatpush1.msra.mxu0 0.0
        %480 = vmatprep.subr.mxu0 0.0
        %481 = vmatpush1.msra.mxu0 0.0
        %482 = vmatprep.subr.mxu0 0.0
        %483 = vmatpush1.msra.mxu0 0.0
        %484 = vmatprep.subr.mxu0 0.0
        %485 = vmatpush1.msra.mxu0 0.0
        %486 = vmatprep.subr.mxu0 0.0
        %487 = vmatpush1.msra.mxu0 0.0
        %488 = vmatprep.subr.mxu0 0.0
        %489 = vmatpush1.msra.mxu0 0.0
        %490 = vmatprep.subr.mxu0 0.0
        %491 = vmatpush1.msra.mxu0 0.0
        %492 = vmatprep.subr.mxu0 0.0
        %493 = vmatpush1.msra.mxu0 0.0
        %494 = vmatprep.subr.mxu0 0.0
        %495 = vmatpush1.msra.mxu0 0.0
        %496 = vmatprep.subr.mxu0 0.0
        %497 = vmatpush1.msra.mxu0 0.0
        %498 = vmatprep.subr.mxu0 0.0
        %499 = vmatpush1.msra.mxu0 0.0
        %500 = vmatprep.mubr.f32.mxu0 0.0
        %501 = vmatmul.mubr.f32.gmra.mrb[0].mxu0 %v187
        %v502 = vpop.f32.mrb[0].mxu0
        %v503 = vadd.f32 %v435, %v502
        %v504 = vpop.f32.mrb[0].mxu0
        %505 = vmatprep.mubr.f32.mxu0 0.0
        %506 = vmatmul.mubr.f32.gmra.mrb[0].mxu0 %v188
        %v507 = vpop.f32.mrb[0].mxu0
        %v508 = vadd.f32 %v435, %v507
        %v509 = vpop.f32.mrb[0].mxu0
        %510 = vmatprep.mubr.f32.mxu0 0.0
        %511 = vmatmul.mubr.f32.gmra.mrb[0].mxu0 %v189
        %v512 = vpop.f32.mrb[0].mxu0
        %v513 = vadd.f32 %v435, %v512
        %v514 = vpop.f32.mrb[0].mxu0
        %515 = vmatprep.mubr.f32.mxu0 0.0
        %516 = vmatmul.mubr.f32.gmra.mrb[0].mxu0 %v190
        %v517 = vpop.f32.mrb[0].mxu0
        %v518 = vadd.f32 %v435, %v517
        %v519 = vpop.f32.mrb[0].mxu0
        %520 = vmatprep.mubr.f32.mxu0 0.0
        %521 = vmatmul.mubr.f32.gmra.mrb[0].mxu0 %v191
        %v522 = vpop.f32.mrb[0].mxu0
        %v523 = vadd.f32 %v435, %v522
        %v524 = vpop.f32.mrb[0].mxu0
        %525 = vmatprep.mubr.f32.mxu0 0.0
        %526 = vmatmul.mubr.f32.gmra.mrb[0].mxu0 %v192
        %v527 = vpop.f32.mrb[0].mxu0
        %v528 = vadd.f32 %v435, %v527
        %v529 = vpop.f32.mrb[0].mxu0
        %530 = vmatprep.mubr.f32.mxu0 0.0
        %531 = vmatmul.mubr.f32.gmra.mrb[0].mxu0 %v193
        %v532 = vpop.f32.mrb[0].mxu0
        %v533 = vadd.f32 %v435, %v532
        %v534 = vpop.f32.mrb[0].mxu0
        %535 = vmatprep.mubr.f32.mxu0 0.0
        %536 = vmatmul.mubr.f32.gmra.mrb[0].mxu0 %v194
        %v537 = vpop.f32.mrb[0].mxu0
        %v538 = vadd.f32 %v435, %v537
        %v539 = vpop.f32.mrb[0].mxu0
        %540 = vmatprep.mubr.f32.mxu0 0.0
        %541 = vmatmul.mubr.f32.gmra.mrb[0].mxu0 %v195
        %v542 = vpop.f32.mrb[0].mxu0
        %v543 = vadd.f32 %v435, %v542
        %v544 = vpop.f32.mrb[0].mxu0
        %545 = vmatprep.mubr.f32.mxu0 0.0
        %546 = vmatmul.mubr.f32.gmra.mrb[0].mxu0 %v196
        %v547 = vpop.f32.mrb[0].mxu0
        %v548 = vadd.f32 %v435, %v547
        %v549 = vpop.f32.mrb[0].mxu0
        %550 = vmatprep.mubr.f32.mxu0 0.0
        %551 = vmatmul.mubr.f32.gmra.mrb[0].mxu0 %v197
        %v552 = vpop.f32.mrb[0].mxu0
        %v553 = vadd.f32 %v435, %v552
        %v554 = vpop.f32.mrb[0].mxu0
        %555 = vmatprep.mubr.f32.mxu0 0.0
        %556 = vmatmul.mubr.f32.gmra.mrb[0].mxu0 %v198
        %v557 = vpop.f32.mrb[0].mxu0
        %v558 = vadd.f32 %v435, %v557
        %v559 = vpop.f32.mrb[0].mxu0
        %560 = vmatprep.mubr.f32.mxu0 0.0
        %561 = vmatmul.mubr.f32.gmra.mrb[0].mxu0 %v199
        %v562 = vpop.f32.mrb[0].mxu0
        %v563 = vadd.f32 %v435, %v562
        %v564 = vpop.f32.mrb[0].mxu0
        %565 = vmatprep.mubr.f32.mxu0 0.0
        %566 = vmatmul.mubr.f32.gmra.mrb[0].mxu0 %v200
        %v567 = vpop.f32.mrb[0].mxu0
        %v568 = vadd.f32 %v435, %v567
        %v569 = vpop.f32.mrb[0].mxu0
        %570 = vmatprep.mubr.f32.mxu0 0.0
        %571 = vmatmul.mubr.f32.gmra.mrb[0].mxu0 %v201
        %v572 = vpop.f32.mrb[0].mxu0
        %v573 = vadd.f32 %v435, %v572
        %v574 = vpop.f32.mrb[0].mxu0
        %575 = vmatprep.mubr.f32.mxu0 0.0
        %576 = vmatmul.mubr.f32.gmra.mrb[0].mxu0 %v202
        %v577 = vpop.f32.mrb[0].mxu0
        %v578 = vadd.f32 %v435, %v577
        %v579 = vpop.f32.mrb[0].mxu0
        %580 = vdwg.mxu0
        %v581 = vmax.f32 %v503, 0.0
        %v582 = vmax.f32 %v508, 0.0
        %v583 = vmax.f32 %v513, 0.0
        %v584 = vmax.f32 %v518, 0.0
        %v585 = vmax.f32 %v523, 0.0
        %v586 = vmax.f32 %v528, 0.0
        %v587 = vmax.f32 %v533, 0.0
        %v588 = vmax.f32 %v538, 0.0
        %v589 = vmax.f32 %v543, 0.0
        %v590 = vmax.f32 %v548, 0.0
        %v591 = vmax.f32 %v553, 0.0
        %v592 = vmax.f32 %v558, 0.0
        %v593 = vmax.f32 %v563, 0.0
        %v594 = vmax.f32 %v568, 0.0
        %v595 = vmax.f32 %v573, 0.0
        %v596 = vmax.f32 %v578, 0.0
        %597 = vmatprep.subr.mxu0 0.0
        %598 = vmatpush1.msra.mxu0 %v205
        %599 = vmatprep.subr.mxu0 0.0
        %600 = vmatpush1.msra.mxu0 %v206
        %601 = vmatprep.subr.mxu0 0.0
        %602 = vmatpush1.msra.mxu0 %v207
        %603 = vmatprep.subr.mxu0 0.0
        %604 = vmatpush1.msra.mxu0 %v208
        %605 = vmatprep.subr.mxu0 0.0
        %606 = vmatpush1.msra.mxu0 %v209
        %607 = vmatprep.subr.mxu0 0.0
        %608 = vmatpush1.msra.mxu0 %v210
        %609 = vmatprep.subr.mxu0 0.0
        %610 = vmatpush1.msra.mxu0 %v211
        %611 = vmatprep.subr.mxu0 0.0
        %612 = vmatpush1.msra.mxu0 %v212
        %613 = vmatprep.subr.mxu0 0.0
        %614 = vmatpush1.msra.mxu0 %v213
        %615 = vmatprep.subr.mxu0 0.0
        %616 = vmatpush1.msra.mxu0 %v214
        %617 = vmatprep.subr.mxu0 0.0
        %618 = vmatpush1.msra.mxu0 %v215
        %619 = vmatprep.subr.mxu0 0.0
        %620 = vmatpush1.msra.mxu0 %v216
        %621 = vmatprep.subr.mxu0 0.0
        %622 = vmatpush1.msra.mxu0 %v217
        %623 = vmatprep.subr.mxu0 0.0
        %624 = vmatpush1.msra.mxu0 %v218
        %625 = vmatprep.subr.mxu0 0.0
        %626 = vmatpush1.msra.mxu0 %v219
        %627 = vmatprep.subr.mxu0 0.0
        %628 = vmatpush1.msra.mxu0 %v220
        %629 = vmatprep.subr.mxu0 0.0
        %630 = vmatpush1.msra.mxu0 0.0
        %631 = vmatprep.subr.mxu0 0.0
        %632 = vmatpush1.msra.mxu0 0.0
        %633 = vmatprep.subr.mxu0 0.0
        %634 = vmatpush1.msra.mxu0 0.0
        %635 = vmatprep.subr.mxu0 0.0
        %636 = vmatpush1.msra.mxu0 0.0
        %637 = vmatprep.subr.mxu0 0.0
        %638 = vmatpush1.msra.mxu0 0.0
        %639 = vmatprep.subr.mxu0 0.0
        %640 = vmatpush1.msra.mxu0 0.0
        %641 = vmatprep.subr.mxu0 0.0
        %642 = vmatpush1.msra.mxu0 0.0
        %643 = vmatprep.subr.mxu0 0.0
        %644 = vmatpush1.msra.mxu0 0.0
        %645 = vmatprep.subr.mxu0 0.0
        %646 = vmatpush1.msra.mxu0 0.0
        %647 = vmatprep.subr.mxu0 0.0
        %648 = vmatpush1.msra.mxu0 0.0
        %649 = vmatprep.subr.mxu0 0.0
        %650 = vmatpush1.msra.mxu0 0.0
        %651 = vmatprep.subr.mxu0 0.0
        %652 = vmatpush1.msra.mxu0 0.0
        %653 = vmatprep.subr.mxu0 0.0
        %654 = vmatpush1.msra.mxu0 0.0
        %655 = vmatprep.subr.mxu0 0.0
        %656 = vmatpush1.msra.mxu0 0.0
        %657 = vmatprep.subr.mxu0 0.0
        %658 = vmatpush1.msra.mxu0 0.0
        %659 = vmatprep.subr.mxu0 0.0
        %660 = vmatpush1.msra.mxu0 0.0
        %661 = vmatprep.mubr.f32.mxu0 0.0
        %662 = vmatmul.mubr.f32.gmra.mrb[0].mxu0 %v581
        %v663 = vpop.f32.mrb[0].mxu0
        %v664 = vadd.f32 0.0, %v663
        %v665 = vpop.f32.mrb[0].mxu0
        %666 = vmatprep.mubr.f32.mxu0 0.0
        %667 = vmatmul.mubr.f32.gmra.mrb[0].mxu0 %v582
        %v668 = vpop.f32.mrb[0].mxu0
        %v669 = vadd.f32 0.0, %v668
        %v670 = vpop.f32.mrb[0].mxu0
        %671 = vmatprep.mubr.f32.mxu0 0.0
        %672 = vmatmul.mubr.f32.gmra.mrb[0].mxu0 %v583
        %v673 = vpop.f32.mrb[0].mxu0
        %v674 = vadd.f32 0.0, %v673
        %v675 = vpop.f32.mrb[0].mxu0
        %676 = vmatprep.mubr.f32.mxu0 0.0
        %677 = vmatmul.mubr.f32.gmra.mrb[0].mxu0 %v584
        %v678 = vpop.f32.mrb[0].mxu0
        %v679 = vadd.f32 0.0, %v678
        %v680 = vpop.f32.mrb[0].mxu0
        %681 = vmatprep.mubr.f32.mxu0 0.0
        %682 = vmatmul.mubr.f32.gmra.mrb[0].mxu0 %v585
        %v683 = vpop.f32.mrb[0].mxu0
        %v684 = vadd.f32 0.0, %v683
        %v685 = vpop.f32.mrb[0].mxu0
        %686 = vmatprep.mubr.f32.mxu0 0.0
        %687 = vmatmul.mubr.f32.gmra.mrb[0].mxu0 %v586
        %v688 = vpop.f32.mrb[0].mxu0
        %v689 = vadd.f32 0.0, %v688
        %v690 = vpop.f32.mrb[0].mxu0
        %691 = vmatprep.mubr.f32.mxu0 0.0
        %692 = vmatmul.mubr.f32.gmra.mrb[0].mxu0 %v587
        %v693 = vpop.f32.mrb[0].mxu0
        %v694 = vadd.f32 0.0, %v693
        %v695 = vpop.f32.mrb[0].mxu0
        %696 = vmatprep.mubr.f32.mxu0 0.0
        %697 = vmatmul.mubr.f32.gmra.mrb[0].mxu0 %v588
        %v698 = vpop.f32.mrb[0].mxu0
        %v699 = vadd.f32 0.0, %v698
        %v700 = vpop.f32.mrb[0].mxu0
        %701 = vmatprep.mubr.f32.mxu0 0.0
        %702 = vmatmul.mubr.f32.gmra.mrb[0].mxu0 %v589
        %v703 = vpop.f32.mrb[0].mxu0
        %v704 = vadd.f32 0.0, %v703
        %v705 = vpop.f32.mrb[0].mxu0
        %706 = vmatprep.mubr.f32.mxu0 0.0
        %707 = vmatmul.mubr.f32.gmra.mrb[0].mxu0 %v590
        %v708 = vpop.f32.mrb[0].mxu0
        %v709 = vadd.f32 0.0, %v708
        %v710 = vpop.f32.mrb[0].mxu0
        %711 = vmatprep.mubr.f32.mxu0 0.0
        %712 = vmatmul.mubr.f32.gmra.mrb[0].mxu0 %v591
        %v713 = vpop.f32.mrb[0].mxu0
        %v714 = vadd.f32 0.0, %v713
        %v715 = vpop.f32.mrb[0].mxu0
        %716 = vmatprep.mubr.f32.mxu0 0.0
        %717 = vmatmul.mubr.f32.gmra.mrb[0].mxu0 %v592
        %v718 = vpop.f32.mrb[0].mxu0
        %v719 = vadd.f32 0.0, %v718
        %v720 = vpop.f32.mrb[0].mxu0
        %721 = vmatprep.mubr.f32.mxu0 0.0
        %722 = vmatmul.mubr.f32.gmra.mrb[0].mxu0 %v593
        %v723 = vpop.f32.mrb[0].mxu0
        %v724 = vadd.f32 0.0, %v723
        %v725 = vpop.f32.mrb[0].mxu0
        %726 = vmatprep.mubr.f32.mxu0 0.0
        %727 = vmatmul.mubr.f32.gmra.mrb[0].mxu0 %v594
        %v728 = vpop.f32.mrb[0].mxu0
        %v729 = vadd.f32 0.0, %v728
        %v730 = vpop.f32.mrb[0].mxu0
        %731 = vmatprep.mubr.f32.mxu0 0.0
        %732 = vmatmul.mubr.f32.gmra.mrb[0].mxu0 %v595
        %v733 = vpop.f32.mrb[0].mxu0
        %v734 = vadd.f32 0.0, %v733
        %v735 = vpop.f32.mrb[0].mxu0
        %736 = vmatprep.mubr.f32.mxu0 0.0
        %737 = vmatmul.mubr.f32.gmra.mrb[0].mxu0 %v596
        %v738 = vpop.f32.mrb[0].mxu0
        %v739 = vadd.f32 0.0, %v738
        %v740 = vpop.f32.mrb[0].mxu0
        %741 = vdwg.mxu0
        %v742 = vlaneseq
        %v743 = vshrl.u32 %v742, 7
        %v744 = vsub.s32 1, %v743
        %v745 = vrot.slane %v237, %v744
        %746 = vmatprep.subr.mxu0 0.0
        %747 = vmatpush1.msra.mxu0 %v664
        %748 = vmatprep.subr.mxu0 0.0
        %749 = vmatpush1.msra.mxu0 %v669
        %750 = vmatprep.subr.mxu0 0.0
        %751 = vmatpush1.msra.mxu0 %v674
        %752 = vmatprep.subr.mxu0 0.0
        %753 = vmatpush1.msra.mxu0 %v679
        %754 = vmatprep.subr.mxu0 0.0
        %755 = vmatpush1.msra.mxu0 %v684
        %756 = vmatprep.subr.mxu0 0.0
        %757 = vmatpush1.msra.mxu0 %v689
        %758 = vmatprep.subr.mxu0 0.0
        %759 = vmatpush1.msra.mxu0 %v694
        %760 = vmatprep.subr.mxu0 0.0
        %761 = vmatpush1.msra.mxu0 %v699
        %762 = vmatprep.subr.mxu0 0.0
        %763 = vmatpush1.msra.mxu0 %v704
        %764 = vmatprep.subr.mxu0 0.0
        %765 = vmatpush1.msra.mxu0 %v709
        %766 = vmatprep.subr.mxu0 0.0
        %767 = vmatpush1.msra.mxu0 %v714
        %768 = vmatprep.subr.mxu0 0.0
        %769 = vmatpush1.msra.mxu0 %v719
        %770 = vmatprep.subr.mxu0 0.0
        %771 = vmatpush1.msra.mxu0 %v724
        %772 = vmatprep.subr.mxu0 0.0
        %773 = vmatpush1.msra.mxu0 %v729
        %774 = vmatprep.subr.mxu0 0.0
        %775 = vmatpush1.msra.mxu0 %v734
        %776 = vmatprep.subr.mxu0 0.0
        %777 = vmatpush1.msra.mxu0 %v739
        %778 = vmatprep.subr.mxu0 0.0
        %779 = vmatpush1.msra.mxu0 0.0
        %780 = vmatprep.subr.mxu0 0.0
        %781 = vmatpush1.msra.mxu0 0.0
        %782 = vmatprep.subr.mxu0 0.0
        %783 = vmatpush1.msra.mxu0 0.0
        %784 = vmatprep.subr.mxu0 0.0
        %785 = vmatpush1.msra.mxu0 0.0
        %786 = vmatprep.subr.mxu0 0.0
        %787 = vmatpush1.msra.mxu0 0.0
        %788 = vmatprep.subr.mxu0 0.0
        %789 = vmatpush1.msra.mxu0 0.0
        %790 = vmatprep.subr.mxu0 0.0
        %791 = vmatpush1.msra.mxu0 0.0
        %792 = vmatprep.subr.mxu0 0.0
        %793 = vmatpush1.msra.mxu0 0.0
        %794 = vmatprep.subr.mxu0 0.0
        %795 = vmatpush1.msra.mxu0 0.0
        %796 = vmatprep.subr.mxu0 0.0
        %797 = vmatpush1.msra.mxu0 0.0
        %798 = vmatprep.subr.mxu0 0.0
        %799 = vmatpush1.msra.mxu0 0.0
        %800 = vmatprep.subr.mxu0 0.0
        %801 = vmatpush1.msra.mxu0 0.0
        %802 = vmatprep.subr.mxu0 0.0
        %803 = vmatpush1.msra.mxu0 0.0
        %804 = vmatprep.subr.mxu0 0.0
        %805 = vmatpush1.msra.mxu0 0.0
        %806 = vmatprep.subr.mxu0 0.0
        %807 = vmatpush1.msra.mxu0 0.0
        %808 = vmatprep.subr.mxu0 0.0
        %809 = vmatpush1.msra.mxu0 0.0
        %810 = vmatprep.mubr.f32.mxu0 0.0
        %811 = vmatmul.mubr.f32.gmra.mrb[0].mxu0 %v187
        %v812 = vpop.f32.mrb[0].mxu0
        %v813 = vadd.f32 %v745, %v812
        %v814 = vpop.f32.mrb[0].mxu0
        %815 = vmatprep.mubr.f32.mxu0 0.0
        %816 = vmatmul.mubr.f32.gmra.mrb[0].mxu0 %v188
        %v817 = vpop.f32.mrb[0].mxu0
        %v818 = vadd.f32 %v745, %v817
        %v819 = vpop.f32.mrb[0].mxu0
        %820 = vmatprep.mubr.f32.mxu0 0.0
        %821 = vmatmul.mubr.f32.gmra.mrb[0].mxu0 %v189
        %v822 = vpop.f32.mrb[0].mxu0
        %v823 = vadd.f32 %v745, %v822
        %v824 = vpop.f32.mrb[0].mxu0
        %825 = vmatprep.mubr.f32.mxu0 0.0
        %826 = vmatmul.mubr.f32.gmra.mrb[0].mxu0 %v190
        %v827 = vpop.f32.mrb[0].mxu0
        %v828 = vadd.f32 %v745, %v827
        %v829 = vpop.f32.mrb[0].mxu0
        %830 = vmatprep.mubr.f32.mxu0 0.0
        %831 = vmatmul.mubr.f32.gmra.mrb[0].mxu0 %v191
        %v832 = vpop.f32.mrb[0].mxu0
        %v833 = vadd.f32 %v745, %v832
        %v834 = vpop.f32.mrb[0].mxu0
        %835 = vmatprep.mubr.f32.mxu0 0.0
        %836 = vmatmul.mubr.f32.gmra.mrb[0].mxu0 %v192
        %v837 = vpop.f32.mrb[0].mxu0
        %v838 = vadd.f32 %v745, %v837
        %v839 = vpop.f32.mrb[0].mxu0
        %840 = vmatprep.mubr.f32.mxu0 0.0
        %841 = vmatmul.mubr.f32.gmra.mrb[0].mxu0 %v193
        %v842 = vpop.f32.mrb[0].mxu0
        %v843 = vadd.f32 %v745, %v842
        %v844 = vpop.f32.mrb[0].mxu0
        %845 = vmatprep.mubr.f32.mxu0 0.0
        %846 = vmatmul.mubr.f32.gmra.mrb[0].mxu0 %v194
        %v847 = vpop.f32.mrb[0].mxu0
        %v848 = vadd.f32 %v745, %v847
        %v849 = vpop.f32.mrb[0].mxu0
        %850 = vmatprep.mubr.f32.mxu0 0.0
        %851 = vmatmul.mubr.f32.gmra.mrb[0].mxu0 %v195
        %v852 = vpop.f32.mrb[0].mxu0
        %v853 = vadd.f32 %v745, %v852
        %v854 = vpop.f32.mrb[0].mxu0
        %855 = vmatprep.mubr.f32.mxu0 0.0
        %856 = vmatmul.mubr.f32.gmra.mrb[0].mxu0 %v196
        %v857 = vpop.f32.mrb[0].mxu0
        %v858 = vadd.f32 %v745, %v857
        %v859 = vpop.f32.mrb[0].mxu0
        %860 = vmatprep.mubr.f32.mxu0 0.0
        %861 = vmatmul.mubr.f32.gmra.mrb[0].mxu0 %v197
        %v862 = vpop.f32.mrb[0].mxu0
        %v863 = vadd.f32 %v745, %v862
        %v864 = vpop.f32.mrb[0].mxu0
        %865 = vmatprep.mubr.f32.mxu0 0.0
        %866 = vmatmul.mubr.f32.gmra.mrb[0].mxu0 %v198
        %v867 = vpop.f32.mrb[0].mxu0
        %v868 = vadd.f32 %v745, %v867
        %v869 = vpop.f32.mrb[0].mxu0
        %870 = vmatprep.mubr.f32.mxu0 0.0
        %871 = vmatmul.mubr.f32.gmra.mrb[0].mxu0 %v199
        %v872 = vpop.f32.mrb[0].mxu0
        %v873 = vadd.f32 %v745, %v872
        %v874 = vpop.f32.mrb[0].mxu0
        %875 = vmatprep.mubr.f32.mxu0 0.0
        %876 = vmatmul.mubr.f32.gmra.mrb[0].mxu0 %v200
        %v877 = vpop.f32.mrb[0].mxu0
        %v878 = vadd.f32 %v745, %v877
        %v879 = vpop.f32.mrb[0].mxu0
        %880 = vmatprep.mubr.f32.mxu0 0.0
        %881 = vmatmul.mubr.f32.gmra.mrb[0].mxu0 %v201
        %v882 = vpop.f32.mrb[0].mxu0
        %v883 = vadd.f32 %v745, %v882
        %v884 = vpop.f32.mrb[0].mxu0
        %885 = vmatprep.mubr.f32.mxu0 0.0
        %886 = vmatmul.mubr.f32.gmra.mrb[0].mxu0 %v202
        %v887 = vpop.f32.mrb[0].mxu0
        %v888 = vadd.f32 %v745, %v887
        %v889 = vpop.f32.mrb[0].mxu0
        %890 = vdwg.mxu0
        %v891 = vmax.f32 %v813, 0.0
        %v892 = vmax.f32 %v818, 0.0
        %v893 = vmax.f32 %v823, 0.0
        %v894 = vmax.f32 %v828, 0.0
        %v895 = vmax.f32 %v833, 0.0
        %v896 = vmax.f32 %v838, 0.0
        %v897 = vmax.f32 %v843, 0.0
        %v898 = vmax.f32 %v848, 0.0
        %v899 = vmax.f32 %v853, 0.0
        %v900 = vmax.f32 %v858, 0.0
        %v901 = vmax.f32 %v863, 0.0
        %v902 = vmax.f32 %v868, 0.0
        %v903 = vmax.f32 %v873, 0.0
        %v904 = vmax.f32 %v878, 0.0
        %v905 = vmax.f32 %v883, 0.0
        %v906 = vmax.f32 %v888, 0.0
        %907 = vmatprep.subr.mxu0 0.0
        %908 = vmatpush1.msra.mxu0 %v891
        %909 = vmatprep.subr.mxu0 0.0
        %910 = vmatpush1.msra.mxu0 %v892
        %911 = vmatprep.subr.mxu0 0.0
        %912 = vmatpush1.msra.mxu0 %v893
        %913 = vmatprep.subr.mxu0 0.0
        %914 = vmatpush1.msra.mxu0 %v894
        %915 = vmatprep.subr.mxu0 0.0
        %916 = vmatpush1.msra.mxu0 %v895
        %917 = vmatprep.subr.mxu0 0.0
        %918 = vmatpush1.msra.mxu0 %v896
        %919 = vmatprep.subr.mxu0 0.0
        %920 = vmatpush1.msra.mxu0 %v897
        %921 = vmatprep.subr.mxu0 0.0
        %922 = vmatpush1.msra.mxu0 %v898
        %923 = vmatprep.subr.mxu0 0.0
        %924 = vmatpush1.msra.mxu0 %v899
        %925 = vmatprep.subr.mxu0 0.0
        %926 = vmatpush1.msra.mxu0 %v900
        %927 = vmatprep.subr.mxu0 0.0
        %928 = vmatpush1.msra.mxu0 %v901
        %929 = vmatprep.subr.mxu0 0.0
        %930 = vmatpush1.msra.mxu0 %v902
        %931 = vmatprep.subr.mxu0 0.0
        %932 = vmatpush1.msra.mxu0 %v903
        %933 = vmatprep.subr.mxu0 0.0
        %934 = vmatpush1.msra.mxu0 %v904
        %935 = vmatprep.subr.mxu0 0.0
        %936 = vmatpush1.msra.mxu0 %v905
        %937 = vmatprep.subr.mxu0 0.0
        %938 = vmatpush1.msra.mxu0 %v906
        %939 = vmatprep.subr.mxu0 0.0
        %940 = vmatpush1.msra.mxu0 0.0
        %941 = vmatprep.subr.mxu0 0.0
        %942 = vmatpush1.msra.mxu0 0.0
        %943 = vmatprep.subr.mxu0 0.0
        %944 = vmatpush1.msra.mxu0 0.0
        %945 = vmatprep.subr.mxu0 0.0
        %946 = vmatpush1.msra.mxu0 0.0
        %947 = vmatprep.subr.mxu0 0.0
        %948 = vmatpush1.msra.mxu0 0.0
        %949 = vmatprep.subr.mxu0 0.0
        %950 = vmatpush1.msra.mxu0 0.0
        %951 = vmatprep.subr.mxu0 0.0
        %952 = vmatpush1.msra.mxu0 0.0
        %953 = vmatprep.subr.mxu0 0.0
        %954 = vmatpush1.msra.mxu0 0.0
        %955 = vmatprep.subr.mxu0 0.0
        %956 = vmatpush1.msra.mxu0 0.0
        %957 = vmatprep.subr.mxu0 0.0
        %958 = vmatpush1.msra.mxu0 0.0
        %959 = vmatprep.subr.mxu0 0.0
        %960 = vmatpush1.msra.mxu0 0.0
        %961 = vmatprep.subr.mxu0 0.0
        %962 = vmatpush1.msra.mxu0 0.0
        %963 = vmatprep.subr.mxu0 0.0
        %964 = vmatpush1.msra.mxu0 0.0
        %965 = vmatprep.subr.mxu0 0.0
        %966 = vmatpush1.msra.mxu0 0.0
        %967 = vmatprep.subr.mxu0 0.0
        %968 = vmatpush1.msra.mxu0 0.0
        %969 = vmatprep.subr.mxu0 0.0
        %970 = vmatpush1.msra.mxu0 0.0
        %971 = vmatprep.mubr.f32.mxu0 0.0
        %972 = vmatmul.mubr.f32.gmra.mrb[0].mxu0 %v203
        %v973 = vpop.f32.mrb[0].mxu0
        %v974 = vadd.f32 0.0, %v973
        %v975 = vpop.f32.mrb[0].mxu0
        %976 = vdwg.mxu0
        %v977 = vlaneseq
        %v978 = vshrl.u32 %v977, 7
        %v979 = vsub.s32 2, %v978
        %v980 = vrot.slane %v237, %v979
        %981 = vmatprep.subr.mxu0 0.0
        %982 = vmatpush1.msra.mxu0 %v221
        %983 = vmatprep.subr.mxu0 0.0
        %984 = vmatpush1.msra.mxu0 %v222
        %985 = vmatprep.subr.mxu0 0.0
        %986 = vmatpush1.msra.mxu0 %v223
        %987 = vmatprep.subr.mxu0 0.0
        %988 = vmatpush1.msra.mxu0 %v224
        %989 = vmatprep.subr.mxu0 0.0
        %990 = vmatpush1.msra.mxu0 %v225
        %991 = vmatprep.subr.mxu0 0.0
        %992 = vmatpush1.msra.mxu0 %v226
        %993 = vmatprep.subr.mxu0 0.0
        %994 = vmatpush1.msra.mxu0 %v227
        %995 = vmatprep.subr.mxu0 0.0
        %996 = vmatpush1.msra.mxu0 %v228
        %997 = vmatprep.subr.mxu0 0.0
        %998 = vmatpush1.msra.mxu0 %v229
        %999 = vmatprep.subr.mxu0 0.0
        %1000 = vmatpush1.msra.mxu0 %v230
        %1001 = vmatprep.subr.mxu0 0.0
        %1002 = vmatpush1.msra.mxu0 %v231
        %1003 = vmatprep.subr.mxu0 0.0
        %1004 = vmatpush1.msra.mxu0 %v232
        %1005 = vmatprep.subr.mxu0 0.0
        %1006 = vmatpush1.msra.mxu0 %v233
        %1007 = vmatprep.subr.mxu0 0.0
        %1008 = vmatpush1.msra.mxu0 %v234
        %1009 = vmatprep.subr.mxu0 0.0
        %1010 = vmatpush1.msra.mxu0 %v235
        %1011 = vmatprep.subr.mxu0 0.0
        %1012 = vmatpush1.msra.mxu0 %v236
        %1013 = vmatprep.subr.mxu0 0.0
        %1014 = vmatpush1.msra.mxu0 0.0
        %1015 = vmatprep.subr.mxu0 0.0
        %1016 = vmatpush1.msra.mxu0 0.0
        %1017 = vmatprep.subr.mxu0 0.0
        %1018 = vmatpush1.msra.mxu0 0.0
        %1019 = vmatprep.subr.mxu0 0.0
        %1020 = vmatpush1.msra.mxu0 0.0
        %1021 = vmatprep.subr.mxu0 0.0
        %1022 = vmatpush1.msra.mxu0 0.0
        %1023 = vmatprep.subr.mxu0 0.0
        %1024 = vmatpush1.msra.mxu0 0.0
        %1025 = vmatprep.subr.mxu0 0.0
        %1026 = vmatpush1.msra.mxu0 0.0
        %1027 = vmatprep.subr.mxu0 0.0
        %1028 = vmatpush1.msra.mxu0 0.0
        %1029 = vmatprep.subr.mxu0 0.0
        %1030 = vmatpush1.msra.mxu0 0.0
        %1031 = vmatprep.subr.mxu0 0.0
        %1032 = vmatpush1.msra.mxu0 0.0
        %1033 = vmatprep.subr.mxu0 0.0
        %1034 = vmatpush1.msra.mxu0 0.0
        %1035 = vmatprep.subr.mxu0 0.0
        %1036 = vmatpush1.msra.mxu0 0.0
        %1037 = vmatprep.subr.mxu0 0.0
        %1038 = vmatpush1.msra.mxu0 0.0
        %1039 = vmatprep.subr.mxu0 0.0
        %1040 = vmatpush1.msra.mxu0 0.0
        %1041 = vmatprep.subr.mxu0 0.0
        %1042 = vmatpush1.msra.mxu0 0.0
        %1043 = vmatprep.subr.mxu0 0.0
        %1044 = vmatpush1.msra.mxu0 0.0
        %1045 = vmatprep.mubr.f32.mxu0 0.0
        %1046 = vmatmul.mubr.f32.gmra.mrb[0].mxu0 %v974
        %v1047 = vpop.f32.mrb[0].mxu0
        %v1048 = vadd.f32 %v980, %v1047
        %v1049 = vpop.f32.mrb[0].mxu0
        %1050 = vdwg.mxu0
        %1051 = vst [vmem:[%s164] sm:$0xff] %v1048
        %s1052 = sand.u32 %s93, 1
        %s1053 = scalar_lea.sflag [#allocation3], %s1052
        %s1054 = sand.u32 %s93, 1
        %s1055 = smul.addr %s1054, 8
        %s1056 = scalar_lea.vmem [#allocation2], %s1055
        // Predicated region
        $region33: #{tpu_custom_call.1} parent=31 // pred_check
          %p1057 = pneg %p103
        $region34: #{tpu_custom_call.1} parent=31 // pred_check_branch
          %1059 = sbr.rel (%p1057) target = $region36
        $region35: #{tpu_custom_call.1} parent=31 // pred_region
          %s1061 = ssub.s32 128, 128
          %1062 = vsyncadd %s1053, %s1061
          %s1063 = smul.addr %s17, 128
          %s1064 = scalar_lea.hbm %s3, %s1063
          %s1066 = sshll.u32 %s1056, 4
          %s1067 = int_to_ptr.vmem [resolvable:$true] %s1066
          %1069 = dma.vmem_to_hbm [thread:$0]  %s1067, 128, %s1064, %s1053
        $region36: #{tpu_custom_call.1} parent=31 // pred_fallthru
          _
      $region32: #{tpu_custom_call.1} parent=5 // pred_fallthru
        _
      %p1070 = scmp.le.s32.totalorder 2, %s12
      // Predicated region
      $region37: #{tpu_custom_call.1} parent=5 // pred_check
        %p1071 = pneg %p1070
      $region38: #{tpu_custom_call.1} parent=5 // pred_check_branch
        %1073 = sbr.rel (%p1071) target = $region40
      $region39: #{tpu_custom_call.1} parent=5 // pred_region
        %s1074 = ssub.s32 %s12, 2
        // Predicated region
        $region41: #{tpu_custom_call.1} parent=39 // pred_check
          %p1075 = pneg %p109
        $region42: #{tpu_custom_call.1} parent=39 // pred_check_branch
          %1077 = sbr.rel (%p1075) target = $region44
        $region43: #{tpu_custom_call.1} parent=39 // pred_region
          %s1078 = sand.u32 %s94, 1
          %s1079 = scalar_lea.sflag [#allocation3], %s1078
          %s1080 = sand.u32 %s94, 1
          %s1081 = smul.addr %s1080, 8
          %s1082 = scalar_lea.vmem [#allocation2], %s1081
          %1083 = dma.done %s1079, 128
        $region44: #{tpu_custom_call.1} parent=39 // pred_fallthru
          _
      $region40: #{tpu_custom_call.1} parent=5 // pred_fallthru
        _
    $region6: #{tpu_custom_call.1} parent=1 // loop_footer
      %s16 = sadd.s32 1, %s12
    $region7: #{tpu_custom_call.1} parent=1 // loop_footer_branch
      %11 = sbr.rel target = $region3
    $region8: #{tpu_custom_call.1} parent=1 // loop_exit
      _
    %1084 = vsyncpa [#allocation3], 1
    %s1085 = scalar_lea.sflag [#allocation3], 1
    %1086 = vsyncpa %s1085, 1

</llo_original>
